<compile_context>
chip_gen: v7x
topology: tpu7x:2x2x1
jax: 0.10.0
libtpu: 0.0.40
codegen_flags: <defaults>
</compile_context>

<pallas_src>
import math

import numpy as np

import jax
import jax.numpy as jnp
from jax import lax
from jax.experimental import pallas as pl
from jax.experimental.pallas import tpu as pltpu

# ----------------------------- config ---------------------------------------
LOAD_SCREEN_CONTENT = False
REFINE_NET_USE_SKIP = True
REFINE_NET_USE_RNN = False          # Bottleneck.forward is identity in this case
REFINE_NET_NUM_FEATURES = 256
SCREEN_SIZE = (128, 72)             # (W, H) like the torch config -> target (72, 128)

# (channels, H, W, num_encoder_blocks) outermost -> innermost
LEVELS = [
    (16, 72, 128, 1),
    (32, 36, 64, 2),
    (64, 18, 32, 2),
    (128, 9, 16, 2),
    (256, 5, 8, 2),
]
BOTTLENECK_SHAPE = (REFINE_NET_NUM_FEATURES, 5, 8)

ACT_DTYPE = jnp.bfloat16    # inter-kernel activation dtype (HBM traffic)
MM_DTYPE = jnp.bfloat16     # MXU input dtype
FUSE_MAX_S = 576            # fuse every wrap level whose spatial size <= this

_TAPS = ((-1, -1), (-1, 0), (-1, 1),
         (0, -1), (0, 0), (0, 1),
         (1, -1), (1, 0), (1, 1))


def _vmem_limit_bytes():
    # v7x: 64 MiB per TensorCore -> keep <= 48 MiB.  v5e/v6e: 128 MiB -> allow 96 MiB.
    limit = 64 * 1024 * 1024
    try:
        kind = jax.devices()[0].device_kind.lower()
        limit = 48 * 1024 * 1024 if "7" in kind else 96 * 1024 * 1024
    except Exception:  # pragma: no cover
        pass
    try:
        cap = int(pltpu.get_tpu_info().vmem_capacity_bytes)
        limit = min(limit, max(32 * 1024 * 1024, (cap * 3) // 4))
    except Exception:  # pragma: no cover
        pass
    return limit


VMEM_LIMIT = _vmem_limit_bytes()


def _compiler_params():
    return pltpu.CompilerParams(dimension_semantics=("parallel",),
                                vmem_limit_bytes=VMEM_LIMIT)


def _const_spec(a):
    nd = int(a.ndim)
    return pl.BlockSpec(tuple(int(d) for d in a.shape),
                        lambda n, _nd=nd: (0,) * _nd)


# --------------------------- in-kernel helpers --------------------------------
def _inorm(x):
    """InstanceNorm2d statistics (per channel over flat spatial), eps=1e-5."""
    mean = jnp.mean(x, axis=1, keepdims=True)
    var = jnp.mean(jnp.square(x - mean), axis=1, keepdims=True)
    return (x - mean) * lax.rsqrt(var + 1e-5)


def _act(v, leaky):
    return jnp.where(v >= 0.0, v, 0.01 * v) if leaky else jnp.maximum(v, 0.0)


# ---------------------- fused single-conv kernel ------------------------------
def fused_conv(x, w, b, *, H, W, gamma=None, beta=None, pre_act=None,
               post_act=None, ksize=3, out_dtype=ACT_DTYPE):
    """x: (N, Cin, H, W).  w: (Cout, k*k*Cin) bf16 (tap-major cols).  b: (Cout, 1) f32.

    Computes conv_k( act( instance_norm(x) ) ) + bias [post_act]; norm/activation are
    optional and applied BEFORE the conv (pre-activation ordering)."""
    N, Cin = int(x.shape[0]), int(x.shape[1])
    Cout = int(w.shape[0])
    S = H * W
    P = W + 1
    Spad = S + 2 * P
    use_norm = gamma is not None
    xf = x.reshape(N, Cin, S)

    def kernel(*refs):
        it = iter(refs)
        x_ref = next(it)
        g_ref = next(it) if use_norm else None
        bt_ref = next(it) if use_norm else None
        w_ref, b_ref = next(it), next(it)
        o_ref = next(it)
        if ksize == 3:
            pad_ref, col_ref = next(it), next(it)

        xv = x_ref[0]
        if use_norm:                                      # InstanceNorm2d(affine)
            xv = _inorm(xv.astype(jnp.float32)) * g_ref[...] + bt_ref[...]
        if pre_act == "relu":
            xv = jnp.maximum(xv, 0.0)
        elif pre_act == "leaky_relu":
            xv = jnp.where(xv >= 0.0, xv, 0.01 * xv)

        if ksize == 1:
            acc = jnp.dot(w_ref[...], xv.astype(MM_DTYPE),
                          preferred_element_type=jnp.float32)
        else:
            col_ids = lax.broadcasted_iota(jnp.int32, (1, S), 1) % W
            not_first = col_ids != 0
            not_last = col_ids != (W - 1)
            # zero only the halo columns; interior is fully overwritten below.
            pad_ref[:, :P] = jnp.zeros((Cin, P), MM_DTYPE)
            pad_ref[:, P + S:] = jnp.zeros((Cin, P), MM_DTYPE)
            pad_ref[:, P:P + S] = xv.astype(MM_DTYPE)      # bf16 staging
            for tap, (dy, dx) in enumerate(_TAPS):
                s0 = P + dy * W + dx
                xs = pad_ref[:, s0:s0 + S]
                if dx == -1:
                    xs = jnp.where(not_first, xs, 0.0)
                elif dx == 1:
                    xs = jnp.where(not_last, xs, 0.0)
                col_ref[tap * Cin:(tap + 1) * Cin, :] = xs
            acc = jnp.dot(w_ref[...], col_ref[...],
                          preferred_element_type=jnp.float32)

        acc = acc + b_ref[...]
        if post_act == "sigmoid":
            acc = jax.nn.sigmoid(acc)
        o_ref[0] = acc.astype(o_ref.dtype)

    in_specs = [pl.BlockSpec((1, Cin, S), lambda n: (n, 0, 0))]
    inputs = [xf]
    if use_norm:
        in_specs += [_const_spec(gamma), _const_spec(beta)]
        inputs += [gamma, beta]
    in_specs += [_const_spec(w), _const_spec(b)]
    inputs += [w, b]
    scratch = []
    if ksize == 3:
        scratch = [pltpu.VMEM((Cin, Spad), MM_DTYPE),
                   pltpu.VMEM((9 * Cin, S), MM_DTYPE)]

    out = pl.pallas_call(
        kernel,
        out_shape=jax.ShapeDtypeStruct((N, Cout, S), out_dtype),
        grid=(N,),
        in_specs=in_specs,
        out_specs=pl.BlockSpec((1, Cout, S), lambda n: (n, 0, 0)),
        scratch_shapes=scratch,
        compiler_params=_compiler_params(),
    )(*inputs)
    return out.reshape(N, Cout, H, W)


# ---------------------- fused BasicBlock kernel (levels 0-1) -------------------
def basic_block(x_parts, p, act, H, W):
    """One pallas_call for a whole pre-activation BasicBlock.

    x_parts: list of (N, Ci, H, W) tensors, conceptually concatenated on channel
    (used by the decoder so the skip-connection concat never round-trips HBM)."""
    N = int(x_parts[0].shape[0])
    cins = [int(xp.shape[1]) for xp in x_parts]
    Cin, Cout = sum(cins), int(p["cout"])
    assert Cin == p["cin"]
    S, P = H * W, W + 1
    Spad = S + 2 * P
    Cmax = max(Cin, Cout)
    has_skip = p["skip"] is not None
    nparts = len(x_parts)
    assert has_skip or (nparts == 1 and Cin == Cout)

    g1, b1 = p["in1"]
    w1, bb1 = p["conv1"]
    g2, b2 = p["in2"]
    w2, bb2 = p["conv2"]
    if has_skip:
        gs, bs = p["skip"]["in"]
        ws, bbs = p["skip"]["conv"]

    leaky = (act == "leaky_relu")

    def kernel(*refs):
        it = iter(refs)
        x_refs = [next(it) for _ in range(nparts)]
        g1_ref, b1_ref = next(it), next(it)
        w1_ref, bb1_ref = next(it), next(it)
        g2_ref, b2_ref = next(it), next(it)
        w2_ref, bb2_ref = next(it), next(it)
        if has_skip:
            gs_ref, bs_ref = next(it), next(it)
            ws_ref, bbs_ref = next(it), next(it)
        o_ref = next(it)
        pad_ref, col_ref, h_ref = next(it), next(it), next(it)
        skip_ref = next(it) if has_skip else None

        col_ids = lax.broadcasted_iota(jnp.int32, (1, S), 1) % W
        not_first = col_ids != 0
        not_last = col_ids != (W - 1)

        # zero only the halo columns each step (keeps the batch axis "parallel"-safe).
        pad_ref[:, :P] = jnp.zeros((Cmax, P), MM_DTYPE)
        pad_ref[:, P + S:] = jnp.zeros((Cmax, P), MM_DTYPE)

        def conv3x3(C, w_ref, bias_ref):
            # pad rows [:C] hold the (bf16) activated input; im2col, one MXU dot.
            for tap, (dy, dx) in enumerate(_TAPS):
                s0 = P + dy * W + dx
                xs = pad_ref[:C, s0:s0 + S]
                if dx == -1:
                    xs = jnp.where(not_first, xs, 0.0)
                elif dx == 1:
                    xs = jnp.where(not_last, xs, 0.0)
                col_ref[tap * C:(tap + 1) * C, :] = xs
            return (jnp.dot(w_ref[...], col_ref[:9 * C, :],
                            preferred_element_type=jnp.float32) + bias_ref[...])

        # --- IN1 (+ 1x1 skip conv); stage act(IN1(x)) into the pad interior (bf16) ---
        c0 = 0
        for i in range(nparts):
            Ci = cins[i]
            xn = _inorm(x_refs[i][0].astype(jnp.float32))
            if has_skip:
                ysv = _act(xn * gs_ref[c0:c0 + Ci, :] + bs_ref[c0:c0 + Ci, :], leaky)
                contrib = jnp.dot(ws_ref[:, c0:c0 + Ci], ysv.astype(MM_DTYPE),
                                  preferred_element_type=jnp.float32)
                if i == 0:
                    skip_ref[...] = contrib
                else:
                    skip_ref[...] = skip_ref[...] + contrib
            a = _act(xn * g1_ref[c0:c0 + Ci, :] + b1_ref[c0:c0 + Ci, :], leaky)
            pad_ref[c0:c0 + Ci, P:P + S] = a.astype(MM_DTYPE)
            c0 += Ci

        # --- conv1: 3x3, Cin -> Cout ---
        h_ref[...] = conv3x3(Cin, w1_ref, bb1_ref)

        # --- IN2 + act; stage into pad rows [:Cout] (bf16) ---
        hn = _inorm(h_ref[...])
        pad_ref[:Cout, P:P + S] = _act(hn * g2_ref[...] + b2_ref[...],
                                       leaky).astype(MM_DTYPE)

        # --- conv2: 3x3, Cout -> Cout, plus residual / skip ---
        y = conv3x3(Cout, w2_ref, bb2_ref)
        if has_skip:
            y = y + skip_ref[...] + bbs_ref[...]
        else:
            y = y + x_refs[0][0].astype(jnp.float32)
        o_ref[0] = y.astype(o_ref.dtype)

    in_specs = [pl.BlockSpec((1, c, S), lambda n: (n, 0, 0)) for c in cins]
    inputs = [xp.reshape(N, c, S) for xp, c in zip(x_parts, cins)]
    consts = [g1, b1, w1, bb1, g2, b2, w2, bb2]
    if has_skip:
        consts += [gs, bs, ws, bbs]
    for a in consts:
        in_specs.append(_const_spec(a))
        inputs.append(a)

    scratch = [pltpu.VMEM((Cmax, Spad), MM_DTYPE),
               pltpu.VMEM((9 * Cmax, S), MM_DTYPE),
               pltpu.VMEM((Cout, S), jnp.float32)]
    if has_skip:
        scratch.append(pltpu.VMEM((Cout, S), jnp.float32))

    out = pl.pallas_call(
        kernel,
        out_shape=jax.ShapeDtypeStruct((N, Cout, S), ACT_DTYPE),
        grid=(N,),
        in_specs=in_specs,
        out_specs=pl.BlockSpec((1, Cout, S), lambda n: (n, 0, 0)),
        scratch_shapes=scratch,
        compiler_params=_compiler_params(),
    )(*inputs)
    return out.reshape(N, Cout, H, W)


# ------------------------- bilinear resize (standalone) ------------------------
def _interp_matrix(n_in, n_out):
    """PyTorch bilinear (align_corners=False) interpolation matrix (n_out, n_in)."""
    scale = n_in / n_out
    m = np.zeros((n_out, n_in), np.float32)
    for o in range(n_out):
        src = max((o + 0.5) * scale - 0.5, 0.0)
        i0 = min(int(math.floor(src)), n_in - 1)
        i1 = min(i0 + 1, n_in - 1)
        l1 = float(src - i0)
        m[o, i0] += 1.0 - l1
        m[o, i1] += l1
    return m


def bilinear_resize(x, out_hw, out_dtype=ACT_DTYPE):
    """x: (N, C, Hin, Win) -> (N, C, Hout, Wout); bilinear, align_corners=False.
    Two batched matmuls (W pass, then H pass) -- no per-channel Python loop."""
    N, C, Hin, Win = map(int, x.shape)
    Ho, Wo = out_hw
    ah = jnp.asarray(_interp_matrix(Hin, Ho))          # (Ho, Hin)
    awt = jnp.asarray(_interp_matrix(Win, Wo).T)       # (Win, Wo)

    def kernel(x_ref, ah_ref, awt_ref, o_ref):
        xv = x_ref[0].astype(jnp.float32)                              # (C, Hin, Win)
        awb = jnp.broadcast_to(awt_ref[...], (C, Win, Wo))
        t = lax.dot_general(xv, awb, (((2,), (1,)), ((0,), (0,))),
                            preferred_element_type=jnp.float32)        # (C, Hin, Wo)
        ahb = jnp.broadcast_to(ah_ref[...], (C, Ho, Hin))
        y = lax.dot_general(ahb, t, (((2,), (1,)), ((0,), (0,))),
                            preferred_element_type=jnp.float32)        # (C, Ho, Wo)
        o_ref[0] = y.astype(o_ref.dtype)

    return pl.pallas_call(
        kernel,
        out_shape=jax.ShapeDtypeStruct((N, C, Ho, Wo), out_dtype),
        grid=(N,),
        in_specs=[pl.BlockSpec((1, C, Hin, Win), lambda n: (n, 0, 0, 0)),
                  _const_spec(ah), _const_spec(awt)],
        out_specs=pl.BlockSpec((1, C, Ho, Wo), lambda n: (n, 0, 0, 0)),
        compiler_params=_compiler_params(),
    )(x, ah, awt)


# ------------------------ 2x2 max pool (standalone) ----------------------------
def _pool_windows(n_in, n_out):
    return [((i * n_in) // n_out, -((-(i + 1) * n_in) // n_out))
            for i in range(n_out)]


def max_pool_2x2(x, out_dtype=ACT_DTYPE):
    """x: (N, C, H, W) -> (N, C, H/2, W/2).  Pairwise VPU max + one-hot decimation
    matmuls (exact for the bf16 inputs these kernels exchange)."""
    N, C, H, W = map(int, x.shape)
    assert H % 2 == 0 and W % 2 == 0
    Ho, Wo = H // 2, W // 2
    selr = np.zeros((Ho, H - 1), np.float32)
    selr[np.arange(Ho), 2 * np.arange(Ho)] = 1.0
    selc = np.zeros((W - 1, Wo), np.float32)
    selc[2 * np.arange(Wo), np.arange(Wo)] = 1.0
    selr, selc = jnp.asarray(selr), jnp.asarray(selc)

    def kernel(x_ref, sr_ref, sc_ref, o_ref):
        xv = x_ref[0].astype(jnp.float32)                               # (C, H, W)
        m = jnp.maximum(xv[:, :H - 1, :], xv[:, 1:, :])
        m = jnp.maximum(m[:, :, :W - 1], m[:, :, 1:])                   # (C, H-1, W-1)
        srb = jnp.broadcast_to(sr_ref[...], (C, Ho, H - 1))
        t = lax.dot_general(srb, m, (((2,), (1,)), ((0,), (0,))),
                            preferred_element_type=jnp.float32)         # (C, Ho, W-1)
        scb = jnp.broadcast_to(sc_ref[...], (C, W - 1, Wo))
        y = lax.dot_general(t, scb, (((2,), (1,)), ((0,), (0,))),
                            preferred_element_type=jnp.float32)         # (C, Ho, Wo)
        o_ref[0] = y.astype(o_ref.dtype)

    return pl.pallas_call(
        kernel,
        out_shape=jax.ShapeDtypeStruct((N, C, Ho, Wo), out_dtype),
        grid=(N,),
        in_specs=[pl.BlockSpec((1, C, H, W), lambda n: (n, 0, 0, 0)),
                  _const_spec(selr), _const_spec(selc)],
        out_specs=pl.BlockSpec((1, C, Ho, Wo), lambda n: (n, 0, 0, 0)),
        compiler_params=_compiler_params(),
    )(x, selr, selc)


# ---------------------- fused deep subtree (levels with S <= 576) --------------
def _flat_pool_sels(Hin, Win, Hout, Wout):
    """One-hot selection matrices for adaptive max pool in flat (C, H*W) layout."""
    hwin = _pool_windows(Hin, Hout)
    wwin = _pool_windows(Win, Wout)
    assert min(e - s for s, e in hwin) >= 2 and min(e - s for s, e in wwin) >= 2
    nh = max(e - s for s, e in hwin) - 1
    nw = max(e - s for s, e in wwin) - 1
    sm = Hin * Win - Win - 1
    sels = []
    for kh in range(nh):
        for kw in range(nw):
            sel = np.zeros((sm, Hout * Wout), np.float32)
            for i, (hs, he) in enumerate(hwin):
                r = min(hs + kh, he - 2)
                for j, (ws_, we) in enumerate(wwin):
                    c = min(ws_ + kw, we - 2)
                    sel[r * Win + c, i * Wout + j] = 1.0
            sels.append(jnp.asarray(sel))
    return sels


def _flat_resize_op(Hin, Win, Hout, Wout):
    """Flat bilinear operator:  out(C, Sout) = x(C, Sin) @ op(Sin, Sout)."""
    ah = _interp_matrix(Hin, Hout)           # (Hout, Hin)
    aw = _interp_matrix(Win, Wout)           # (Wout, Win)
    return jnp.asarray(np.kron(ah, aw).T)    # (Hin*Win, Hout*Wout)


def _flat_pool_val(x, W, sel_refs):
    """Adaptive max pool on a flat (C, S) f32 value (window sizes 2-3)."""
    m = jnp.maximum(x[:, :-1], x[:, 1:])
    m = jnp.maximum(m[:, :-W], m[:, W:])
    y = None
    for s in sel_refs:
        d = jnp.dot(m, s[...], preferred_element_type=jnp.float32)
        y = d if y is None else jnp.maximum(y, d)
    return y


def _conv3x3_val(parts, w_ref, b_ref, W, pad_ref):
    """3x3 same-padding conv on flat (Ci, S) bf16 parts via 9 shifted-tap matmuls
    accumulated in f32 (no im2col buffer)."""
    S = int(parts[0].shape[1])
    cin_total = sum(int(xp.shape[0]) for xp in parts)
    P = W + 1
    col_ids = lax.broadcasted_iota(jnp.int32, (1, S), 1) % W
    not_first = col_ids != 0
    not_last = col_ids != (W - 1)
    acc = None
    c0 = 0
    for xp in parts:
        ci = int(xp.shape[0])
        pad_ref[:ci, :P] = jnp.zeros((ci, P), pad_ref.dtype)
        pad_ref[:ci, P + S:P + S + P] = jnp.zeros((ci, P), pad_ref.dtype)
        pad_ref[:ci, P:P + S] = xp
        for tap, (dy, dx) in enumerate(_TAPS):
            s0 = P + dy * W + dx
            xs = pad_ref[:ci, s0:s0 + S]
            if dx == -1:
                xs = jnp.where(not_first, xs, 0.0)
            elif dx == 1:
                xs = jnp.where(not_last, xs, 0.0)
            wcol = w_ref[:, tap * cin_total + c0:tap * cin_total + c0 + ci]
            d = jnp.dot(wcol, xs, preferred_element_type=jnp.float32)
            acc = d if acc is None else acc + d
        c0 += ci
    return acc + b_ref[...]


def _bb_val(parts, prefs, has_skip, leaky, W, pad_ref):
    """Whole pre-activation BasicBlock on flat (Ci, S) f32 value parts."""
    g1, b1, w1, bb1, g2, b2, w2, bb2 = prefs[:8]
    if has_skip:
        gs, bs, ws, bbs = prefs[8:12]
    acts = []
    skip_acc = None
    c0 = 0
    for xp in parts:
        ci = int(xp.shape[0])
        xn = _inorm(xp)
        if has_skip:
            ys = _act(xn * gs[c0:c0 + ci, :] + bs[c0:c0 + ci, :], leaky)
            d = jnp.dot(ws[:, c0:c0 + ci], ys.astype(MM_DTYPE),
                        preferred_element_type=jnp.float32)
            skip_acc = d if skip_acc is None else skip_acc + d
        acts.append(_act(xn * g1[c0:c0 + ci, :] + b1[c0:c0 + ci, :],
                         leaky).astype(MM_DTYPE))
        c0 += ci
    h = _conv3x3_val(acts, w1, bb1, W, pad_ref)
    h2 = _act(_inorm(h) * g2[...] + b2[...], leaky).astype(MM_DTYPE)
    y = _conv3x3_val([h2], w2, bb2, W, pad_ref)
    if has_skip:
        y = y + skip_acc + bbs[...]
    else:
        y = y + parts[0]
    return y


def _build_deep_plan(wrap):
    """Linearize the encoder/decoder recursion into (steps, const arrays, pad dims)."""
    steps, consts = [], []
    dims = {"rows": 8, "cols": 128}

    def add_block(p, leaky, h, w, use_push):
        s = h * w
        dims["cols"] = max(dims["cols"], s + 2 * (w + 1))
        dims["rows"] = max(dims["rows"], int(p["cin"]), int(p["cout"]))
        arrs = [p["in1"][0], p["in1"][1], p["conv1"][0], p["conv1"][1],
                p["in2"][0], p["in2"][1], p["conv2"][0], p["conv2"][1]]
        has_skip = p["skip"] is not None
        if has_skip:
            arrs += [p["skip"]["in"][0], p["skip"]["in"][1],
                     p["skip"]["conv"][0], p["skip"]["conv"][1]]
        consts.extend(arrs)
        steps.append(("bb", dict(n=len(arrs), has_skip=has_skip, leaky=leaky,
                                 W=w, use_push=use_push)))

    def rec(wrap):
        h, w = wrap["hw"]
        bh, bw = wrap["bhw"]
        for bp in wrap["enc"]:
            add_block(bp, False, h, w, False)
        steps.append(("push", None))
        if (h, w) != (bh, bw):
            sels = _flat_pool_sels(h, w, bh, bw)
            consts.extend(sels)
            steps.append(("pool", dict(nsel=len(sels), W=w)))
        if wrap["between"] is not None:
            rec(wrap["between"])
        # else: Bottleneck with refine_net_use_rnn=False is the identity.
        # TODO(synk): CRNN/CLSTM/CGRU bottleneck path (refine_net_use_rnn=True).
        if (h, w) != (bh, bw):
            consts.append(_flat_resize_op(bh, bw, h, w))
            steps.append(("resize", None))
        for i, bp in enumerate(wrap["dec"]):
            add_block(bp, True, h, w, i == 0)

    rec(wrap)
    return steps, consts, (dims["rows"], dims["cols"])


def apply_deep_fused(x, wrap):
    """Run an entire deep subtree (all BasicBlocks + pools + upsamples) as ONE
    pallas_call with all weights VMEM-resident and no intermediate HBM traffic."""
    N, C, H, W = map(int, x.shape)
    S = H * W
    steps, consts, (pad_r, pad_c) = _build_deep_plan(wrap)
    Cout = int(wrap["dec"][-1]["cout"])
    n_const = len(consts)
    xf = x.reshape(N, C, S)

    def kernel(*refs):
        x_ref = refs[0]
        o_ref = refs[1 + n_const]
        pad_ref = refs[2 + n_const]
        it = iter(refs[1:1 + n_const])

        xv = x_ref[0].astype(jnp.float32)
        stack = []
        for kind, info in steps:
            if kind == "bb":
                prefs = [next(it) for _ in range(info["n"])]
                parts = [xv]
                if info["use_push"]:
                    enc = stack.pop()
                    if REFINE_NET_USE_SKIP:
                        parts = [xv, enc]
                xv = _bb_val(parts, prefs, info["has_skip"], info["leaky"],
                             info["W"], pad_ref)
            elif kind == "push":
                stack.append(xv)
            elif kind == "pool":
                sels = [next(it) for _ in range(info["nsel"])]
                xv = _flat_pool_val(xv, info["W"], sels)
            else:  # "resize"
                f_ref = next(it)
                xv = jnp.dot(xv, f_ref[...], preferred_element_type=jnp.float32)
        o_ref[0] = xv.astype(o_ref.dtype)

    in_specs = [pl.BlockSpec((1, C, S), lambda n: (n, 0, 0))]
    in_specs += [_const_spec(a) for a in consts]

    out = pl.pallas_call(
        kernel,
        out_shape=jax.ShapeDtypeStruct((N, Cout, S), ACT_DTYPE),
        grid=(N,),
        in_specs=in_specs,
        out_specs=pl.BlockSpec((1, Cout, S), lambda n: (n, 0, 0)),
        scratch_shapes=[pltpu.VMEM((pad_r, pad_c), MM_DTYPE)],
        compiler_params=_compiler_params(),
    )(xf, *consts)
    return out.reshape(N, Cout, H, W)


# ------------------------------ parameters -----------------------------------
class _Keys:
    def __init__(self, seed):
        self._key = jax.random.PRNGKey(seed)

    def next(self):
        self._key, sub = jax.random.split(self._key)
        return sub


def make_conv(kg, k, cin, cout, zero=False):
    """(W bf16 of shape (cout, k*k*cin) with tap-major columns, bias f32 (cout,1))."""
    if zero:
        w = jnp.zeros((cout, k * k * cin), jnp.float32)
    else:
        std = math.sqrt(2.0 / (cout * k * k))   # kaiming_normal_, fan_out, relu
        w = std * jax.random.normal(kg.next(), (cout, k * k, cin), jnp.float32)
        w = w.reshape(cout, k * k * cin)
    return w.astype(MM_DTYPE), jnp.zeros((cout, 1), jnp.float32)


def make_inorm(c):
    return jnp.ones((c, 1), jnp.float32), jnp.zeros((c, 1), jnp.float32)


def make_basic_block(kg, cin, cout):
    p = {"cin": cin, "cout": cout,
         "in1": make_inorm(cin), "conv1": make_conv(kg, 3, cin, cout),
         "in2": make_inorm(cout), "conv2": make_conv(kg, 3, cout, cout),
         "skip": None}
    if cin != cout:
        p["skip"] = {"in": make_inorm(cin), "conv": make_conv(kg, 1, cin, cout)}
    return p


def build_wrap(kg, idx):
    c, h, w, n_enc = LEVELS[idx]
    if idx + 1 < len(LEVELS):
        bc, bh, bw = LEVELS[idx + 1][:3]
    else:
        bc, bh, bw = BOTTLENECK_SHAPE
    enc = [make_basic_block(kg, c, bc)]
    for _ in range(n_enc - 1):
        enc.append(make_basic_block(kg, bc, bc))
    between = build_wrap(kg, idx + 1) if idx + 1 < len(LEVELS) else None
    dec_in = bc + (bc if REFINE_NET_USE_SKIP else 0)
    dec = [make_basic_block(kg, dec_in, c)]
    return {"enc": enc, "dec": dec, "between": between,
            "hw": (h, w), "bhw": (bh, bw)}


def apply_wrap(x, p):
    h, w = p["hw"]
    if h * w <= FUSE_MAX_S:
        return apply_deep_fused(x, p)
    bh, bw = p["bhw"]
    for bp in p["enc"]:
        x = basic_block([x], bp, "relu", h, w)
    encoded = x
    if (h, w) != (bh, bw):
        x = max_pool_2x2(x)
    if p["between"] is not None:
        x = apply_wrap(x, p["between"])
    # else: Bottleneck with refine_net_use_rnn=False is the identity.
    if (h, w) != (bh, bw):
        x = bilinear_resize(x, (h, w))
    first_parts = [x, encoded] if REFINE_NET_USE_SKIP else [x]
    for i, bp in enumerate(p["dec"]):
        x = basic_block(first_parts if i == 0 else [x], bp, "leaky_relu", h, w)
    return x


def build_refine_net(seed=0):
    kg = _Keys(seed)
    in_c = 4 if LOAD_SCREEN_CONTENT else 1
    return {
        "init_conv1": make_conv(kg, 3, in_c, 16),
        "init_in": make_inorm(16),
        "init_conv2": make_conv(kg, 3, 16, 16),
        "net": build_wrap(kg, 0),
        "final_conv1": make_conv(kg, 3, 16, 16),
        # nn.init.zeros_(self.final[-2].weight); conv biases are zero-init anyway
        "final_conv2": make_conv(kg, 1, 16, 1, zero=True),
    }


def refine_net_forward(params, heatmap_initial):
    """heatmap_initial: (N, 1, h0, w0) NCHW  ->  heatmap_final: (N, 1, 72, 128) f32."""
    Hs, Ws = SCREEN_SIZE[1], SCREEN_SIZE[0]
    x = bilinear_resize(heatmap_initial.astype(jnp.float32), (Hs, Ws))
    # TODO(synk): load_screen_content=True path (concat screen_frame) not exercised.
    w, b = params["init_conv1"]
    x = fused_conv(x, w, b, H=Hs, W=Ws, ksize=3)
    g, bt = params["init_in"]
    w, b = params["init_conv2"]
    x = fused_conv(x, w, b, H=Hs, W=Ws, gamma=g, beta=bt, pre_act="relu", ksize=3)
    x = apply_wrap(x, params["net"])
    w, b = params["final_conv1"]
    x = fused_conv(x, w, b, H=Hs, W=Ws, ksize=3)
    w, b = params["final_conv2"]
    out = fused_conv(x, w, b, H=Hs, W=Ws, pre_act="leaky_relu", ksize=1,
                     post_act="sigmoid", out_dtype=jnp.float32)
    return out


if __name__ == "__main__":
    params = build_refine_net(seed=0)
    key = jax.random.PRNGKey(0)
    heatmap_initial = jax.random.uniform(key, (2, 1, 16, 16), jnp.float32)

    heatmap_final = refine_net_forward(params, heatmap_initial)
    heatmap_final = jax.block_until_ready(heatmap_final)

    assert heatmap_final.shape == (2, 1, 72, 128), heatmap_final.shape
    assert heatmap_final.dtype == jnp.float32
    assert bool(jnp.all(jnp.isfinite(heatmap_final)))
    assert bool(jnp.all((heatmap_final >= 0.0) & (heatmap_final <= 1.0)))
    print("KERNEL_OK")
</pallas_src>

<mosaic_0001>
module attributes {stable_mosaic.version = 11 : i64} {
  func.func @kernel(%arg0: i32, %arg1: memref<1x1x16x16xf32, #tpu.memory_space<vmem>>, %arg2: memref<72x16xf32, #tpu.memory_space<vmem>>, %arg3: memref<16x128xf32, #tpu.memory_space<vmem>>, %arg4: memref<1x1x72x128xbf16, #tpu.memory_space<vmem>>) attributes {dimension_semantics = [#tpu.dimension_semantics<parallel>], iteration_bounds = array<i64: 2>, scalar_prefetch = 0 : i64, scratch_operands = 0 : i64, tpu.core_type = #tpu.core_type<tc>, window_params = [{transform_indices = @transform_0, window_bounds = array<i64: 1, 1, 16, 16>}, {pipeline_mode = #tpu.pipeline_mode<synchronous>, transform_indices = @transform_1, window_bounds = array<i64: 72, 16>}, {pipeline_mode = #tpu.pipeline_mode<synchronous>, transform_indices = @transform_2, window_bounds = array<i64: 16, 128>}, {transform_indices = @transform_3, window_bounds = array<i64: 1, 1, 72, 128>}]} {
    %c0 = arith.constant 0 : index
    %c0_0 = arith.constant 0 : index
    %c0_1 = arith.constant 0 : index
    %c0_2 = arith.constant 0 : index
    %0 = vector.load %arg1[%c0, %c0_0, %c0_1, %c0_2] : memref<1x1x16x16xf32, #tpu.memory_space<vmem>>, vector<1x1x16x16xf32>
    %1 = vector.shape_cast %0 : vector<1x1x16x16xf32> to vector<1x16x16xf32>
    %c0_3 = arith.constant 0 : index
    %c0_4 = arith.constant 0 : index
    %2 = vector.load %arg3[%c0_3, %c0_4] : memref<16x128xf32, #tpu.memory_space<vmem>>, vector<16x128xf32>
    %3 = vector.shape_cast %2 : vector<16x128xf32> to vector<1x16x128xf32>
    %cst = arith.constant dense<0.000000e+00> : vector<1x16x128xf32>
    %4 = tpu.matmul %1, %3, %cst {dimension_numbers = #tpu.dot_dimension_numbers<[2], [1], [1], [2], [0, 0, 0, 1, 1, 2], [0], [0]>} : vector<1x16x16xf32>, vector<1x16x128xf32>, vector<1x16x128xf32> -> vector<1x16x128xf32>
    %c0_5 = arith.constant 0 : index
    %c0_6 = arith.constant 0 : index
    %5 = vector.load %arg2[%c0_5, %c0_6] : memref<72x16xf32, #tpu.memory_space<vmem>>, vector<72x16xf32>
    %6 = vector.shape_cast %5 : vector<72x16xf32> to vector<1x72x16xf32>
    %cst_7 = arith.constant dense<0.000000e+00> : vector<1x72x128xf32>
    %7 = tpu.matmul %6, %4, %cst_7 {dimension_numbers = #tpu.dot_dimension_numbers<[2], [1], [1], [2], [0, 0, 0, 1, 1, 2], [0], [0]>} : vector<1x72x16xf32>, vector<1x16x128xf32>, vector<1x72x128xf32> -> vector<1x72x128xf32>
    %8 = arith.truncf %7 : vector<1x72x128xf32> to vector<1x72x128xbf16>
    %c0_8 = arith.constant 0 : index
    %c0_9 = arith.constant 0 : index
    %c0_10 = arith.constant 0 : index
    %c0_11 = arith.constant 0 : index
    %9 = vector.load %arg4[%c0_8, %c0_9, %c0_10, %c0_11] : memref<1x1x72x128xbf16, #tpu.memory_space<vmem>>, vector<1x1x72x128xbf16>
    %10 = vector.shape_cast %9 : vector<1x1x72x128xbf16> to vector<1x72x128xbf16>
    %11 = vector.shape_cast %8 : vector<1x72x128xbf16> to vector<1x1x72x128xbf16>
    tpu.vector_store %arg4[%c0_8, %c0_9, %c0_10, %c0_11], %11 {strides = array<i32>} : memref<1x1x72x128xbf16, #tpu.memory_space<vmem>>, vector<1x1x72x128xbf16>,
    return
  }
  func.func @transform_0(%arg0: i32) -> (i32, i32, i32, i32) {
    %c0_i32 = arith.constant 0 : i32
    %c0_i32_0 = arith.constant 0 : i32
    %c0_i32_1 = arith.constant 0 : i32
    %c0_i32_2 = arith.constant 0 : i32
    return %arg0, %c0_i32, %c0_i32_0, %c0_i32_1 : i32, i32, i32, i32
  }
  func.func @transform_1(%arg0: i32) -> (i32, i32) {
    %c0_i32 = arith.constant 0 : i32
    %c0_i32_0 = arith.constant 0 : i32
    %c0_i32_1 = arith.constant 0 : i32
    return %c0_i32, %c0_i32_0 : i32, i32
  }
  func.func @transform_2(%arg0: i32) -> (i32, i32) {
    %c0_i32 = arith.constant 0 : i32
    %c0_i32_0 = arith.constant 0 : i32
    %c0_i32_1 = arith.constant 0 : i32
    return %c0_i32, %c0_i32_0 : i32, i32
  }
  func.func @transform_3(%arg0: i32) -> (i32, i32, i32, i32) {
    %c0_i32 = arith.constant 0 : i32
    %c0_i32_0 = arith.constant 0 : i32
    %c0_i32_1 = arith.constant 0 : i32
    %c0_i32_2 = arith.constant 0 : i32
    return %arg0, %c0_i32, %c0_i32_0, %c0_i32_1 : i32, i32, i32, i32
  }
}

</mosaic_0001>

<llo_original>
// kernel: tpu_custom_call.1
$region0: #{tpu_custom_call.1}
  #allocation0 [shape = 'u32[]', space=smem, size = 0x4, offset = 0x4, fixed_abs, tag = 'smem constant byte address 0x4 - core index']
  #allocation1 [shape = 'u32[144,128]{1,0:T(1,128)}', space=vmem, size = 0x12000, scoped, tag = 'internal scratch']
  %s0 = inlined_call_operand.hbm [shape: f32[2,1,16,16], index: 0, kind: input, shape index: {}]
  %s1 = inlined_call_operand.hbm [shape: f32[72,16], index: 1, kind: input, shape index: {}]
  %s2 = inlined_call_operand.hbm [shape: f32[16,128], index: 2, kind: input, shape index: {}]
  %s3 = inlined_call_operand.hbm [shape: bf16[2,1,72,128], index: 3, kind: output, shape index: {}]
  %s4 = sld [smem:[#allocation0]]
  $region57: #{tpu_custom_call.1} parent=0
    _
  %s6 = ssub.s32 1, %s4
  %s7 = scalar_select 0, %s6, %s4
  $region1: #{tpu_custom_call.1} parent=0
    #allocation2 [shape = 'u8[16384]{0}', space=vmem, size = 0x4000, scoped, tag = 'input window, operand 0']
    #allocation3 [shape = 's32[2]{0}', space=sflag, size = 0x8, scoped, tag = 'scoped memory for tpu_custom_call.1']
    #allocation4 [shape = 's32[2]{0}', space=sflag, size = 0x8, scoped, tag = 'scoped memory for tpu_custom_call.1']
    #allocation5 [shape = 'u8[36864]{0}', space=vmem, size = 0x9000, scoped, tag = 'input window, operand 1, single buffered']
    #allocation6 [shape = 's32[1]{0}', space=sflag, size = 0x4, scoped, tag = 'scoped memory for tpu_custom_call.1']
    #allocation7 [shape = 'u8[8192]{0}', space=vmem, size = 0x2000, scoped, tag = 'input window, operand 2, single buffered']
    #allocation8 [shape = 'u8[36864]{0}', space=vmem, size = 0x9000, scoped, tag = 'output window, operand 0']
    %8 = vsyncpa [#allocation3], 0
    %s9 = scalar_lea.sflag [#allocation3], 1
    %10 = vsyncpa %s9, 0
    %11 = vsyncpa [#allocation6], 0
    %12 = vsyncpa [#allocation4], 0
    %s13 = scalar_lea.sflag [#allocation4], 1
    %14 = vsyncpa %s13, 0
    loop: start=0, step=1, limit=4
    $region2: #{tpu_custom_call.1} parent=1 // loop_pre_header
      _
    $region3: #{tpu_custom_call.1} parent=1 // loop_header
      %s16 = sphi 0, %s20
      %p17 = scmp.ge.s32.totalorder %s16, 4
      %s26 = sphi 0, %s28
      %s29 = sphi 0, %s26
      %s30 = sphi 0, %s29
      %s46 = sphi 0, %s30
      %s50 = sphi 0, %s50
      %s52 = sphi 0, %s50
      %s53 = sphi 0, %s52
      %s67 = sphi 0, %s53
      %s71 = sphi 0, %s71
      %s73 = sphi 0, %s71
      %s74 = sphi 0, %s73
      %s88 = sphi 0, %s74
      %s94 = sphi 0, %s96
      %s97 = sphi 0, %s94
      %s98 = sphi 0, %s97
      %s114 = sphi 0, %s98
    $region4: #{tpu_custom_call.1} parent=1 // loop_header_branch
      %19 = sbr.rel (%p17) target = $region8
    $region5: #{tpu_custom_call.1} parent=1 // loop_body
      %s21 = ssub.s32 %s16, 1
      %s22 = ssub.s32 %s16, 2
      %s23 = sadd.s32 %s16, 1
      %s24 = ssub.s32 %s16, %s23
      %p25 = scmp.eq.s32.totalorder %s24, 0
      %s27 = sadd.s32 %s26, 1
      %s28 = scalar_select %p25, %s26, %s27
      %p31 = pneg %p25
      %p32 = scmp.eq.s32.totalorder %s16, 1
      %p33 = por %p31, %p32
      %p34 = scmp.ne.s32.totalorder %s26, %s29
      %p35 = scmp.eq.s32.totalorder %s16, 0
      %p36 = por %p34, %p35
      %p37 = scmp.ne.s32.totalorder %s26, %s29
      %p38 = scmp.eq.s32.totalorder %s21, 1
      %p39 = por %p37, %p38
      %p40 = scmp.ne.s32.totalorder %s29, %s30
      %p41 = scmp.eq.s32.totalorder %s21, 0
      %p42 = por %p40, %p41
      %p43 = scmp.ne.s32.totalorder %s29, %s30
      %p44 = scmp.eq.s32.totalorder %s22, 1
      %p45 = por %p43, %p44
      %p47 = scmp.ne.s32.totalorder %s30, %s46
      %p48 = scmp.eq.s32.totalorder %s22, 0
      %p49 = por %p47, %p48
      %s51 = sadd.s32 %s50, 1
      %p54 = scmp.eq.s32.totalorder %s16, 1
      %p55 = scmp.ne.s32.totalorder %s50, %s52
      %p56 = scmp.eq.s32.totalorder %s16, 0
      %p57 = por %p55, %p56
      %p58 = scmp.ne.s32.totalorder %s50, %s52
      %p59 = scmp.eq.s32.totalorder %s21, 1
      %p60 = por %p58, %p59
      %p61 = scmp.ne.s32.totalorder %s52, %s53
      %p62 = scmp.eq.s32.totalorder %s21, 0
      %p63 = por %p61, %p62
      %p64 = scmp.ne.s32.totalorder %s52, %s53
      %p65 = scmp.eq.s32.totalorder %s22, 1
      %p66 = por %p64, %p65
      %p68 = scmp.ne.s32.totalorder %s53, %s67
      %p69 = scmp.eq.s32.totalorder %s22, 0
      %p70 = por %p68, %p69
      %s72 = sadd.s32 %s71, 1
      %p75 = scmp.eq.s32.totalorder %s16, 1
      %p76 = scmp.ne.s32.totalorder %s71, %s73
      %p77 = scmp.eq.s32.totalorder %s16, 0
      %p78 = por %p76, %p77
      %p79 = scmp.ne.s32.totalorder %s71, %s73
      %p80 = scmp.eq.s32.totalorder %s21, 1
      %p81 = por %p79, %p80
      %p82 = scmp.ne.s32.totalorder %s73, %s74
      %p83 = scmp.eq.s32.totalorder %s21, 0
      %p84 = por %p82, %p83
      %p85 = scmp.ne.s32.totalorder %s73, %s74
      %p86 = scmp.eq.s32.totalorder %s22, 1
      %p87 = por %p85, %p86
      %p89 = scmp.ne.s32.totalorder %s74, %s88
      %p90 = scmp.eq.s32.totalorder %s22, 0
      %p91 = por %p89, %p90
      %s92 = ssub.s32 %s16, %s23
      %p93 = scmp.eq.s32.totalorder %s92, 0
      %s95 = sadd.s32 %s94, 1
      %s96 = scalar_select %p93, %s94, %s95
      %p99 = pneg %p93
      %p100 = scmp.eq.s32.totalorder %s16, 1
      %p101 = por %p99, %p100
      %p102 = scmp.ne.s32.totalorder %s94, %s97
      %p103 = scmp.eq.s32.totalorder %s16, 0
      %p104 = por %p102, %p103
      %p105 = scmp.ne.s32.totalorder %s94, %s97
      %p106 = scmp.eq.s32.totalorder %s21, 1
      %p107 = por %p105, %p106
      %p108 = scmp.ne.s32.totalorder %s97, %s98
      %p109 = scmp.eq.s32.totalorder %s21, 0
      %p110 = por %p108, %p109
      %p111 = scmp.ne.s32.totalorder %s97, %s98
      %p112 = scmp.eq.s32.totalorder %s22, 1
      %p113 = por %p111, %p112
      %p115 = scmp.ne.s32.totalorder %s98, %s114
      %p116 = scmp.eq.s32.totalorder %s22, 0
      %p117 = por %p115, %p116
      %p118 = scmp.le.s32.totalorder 1, %s16
      %p119 = scmp.lt.s32.totalorder %s16, 3
      %p120 = pnand %p118, %p119
      %p121 = pneg %p120
      // Predicated region
      $region9: #{tpu_custom_call.1} parent=5 // pred_check
        _
      $region10: #{tpu_custom_call.1} parent=5 // pred_check_branch
        %123 = sbr.rel (%p120) target = $region12
      $region11: #{tpu_custom_call.1} parent=5 // pred_region
        %s124 = ssub.s32 %s16, 1
        // Predicated region
        $region13: #{tpu_custom_call.1} parent=11 // pred_check
          %p125 = pneg %p63
        $region14: #{tpu_custom_call.1} parent=11 // pred_check_branch
          %127 = sbr.rel (%p125) target = $region16
        $region15: #{tpu_custom_call.1} parent=11 // pred_region
          %s129 = ssub.s32 1152, 1152
          %130 = vsyncadd [#allocation6], %s129
          %s131 = sshll.u32 [#allocation5], 4
          %s132 = int_to_ptr.vmem [resolvable:$true] %s131
          %137 = dma.hbm_to_vmem [thread:$0]  %s1, 1152, %s132, [#allocation6], 128, 128, 8
        $region16: #{tpu_custom_call.1} parent=11 // pred_fallthru
          _
        // Predicated region
        $region17: #{tpu_custom_call.1} parent=11 // pred_check
          %p138 = pneg %p84
        $region18: #{tpu_custom_call.1} parent=11 // pred_check_branch
          %140 = sbr.rel (%p138) target = $region20
        $region19: #{tpu_custom_call.1} parent=11 // pred_region
          %s142 = ssub.s32 256, 256
          %143 = vsyncadd [#allocation6], %s142
          %s144 = sshll.u32 [#allocation7], 4
          %s145 = int_to_ptr.vmem [resolvable:$true] %s144
          %150 = dma.hbm_to_vmem [thread:$0]  %s2, 256, %s145, [#allocation6], 128, 128, 8
        $region20: #{tpu_custom_call.1} parent=11 // pred_fallthru
          _
      $region12: #{tpu_custom_call.1} parent=5 // pred_fallthru
        _
      %p151 = scmp.lt.s32.totalorder %s16, 2
      // Predicated region
      $region21: #{tpu_custom_call.1} parent=5 // pred_check
        %p152 = pneg %p151
      $region22: #{tpu_custom_call.1} parent=5 // pred_check_branch
        %154 = sbr.rel (%p152) target = $region24
      $region23: #{tpu_custom_call.1} parent=5 // pred_region
        // Predicated region
        $region25: #{tpu_custom_call.1} parent=23 // pred_check
          %p155 = pneg %p36
        $region26: #{tpu_custom_call.1} parent=23 // pred_check_branch
          %157 = sbr.rel (%p155) target = $region28
        $region27: #{tpu_custom_call.1} parent=23 // pred_region
          %s158 = sand.u32 %s26, 1
          %s159 = scalar_lea.sflag [#allocation3], %s158
          %s160 = sand.u32 %s26, 1
          %s161 = smul.addr %s160, 16
          %s162 = scalar_lea.vmem [#allocation2], %s161
          %s164 = ssub.s32 256, 256
          %165 = vsyncadd %s159, %s164
          %s166 = smul.addr %s16, 2
          %s167 = smul.addr %s166, 128
          %s168 = scalar_lea.hbm %s0, %s167
          %s169 = sshll.u32 %s162, 4
          %s170 = int_to_ptr.vmem [resolvable:$true] %s169
          %175 = dma.hbm_to_vmem [thread:$0]  %s168, 256, %s170, %s159, 128, 128, 8
        $region28: #{tpu_custom_call.1} parent=23 // pred_fallthru
          _
      $region24: #{tpu_custom_call.1} parent=5 // pred_fallthru
        _
      %p176 = scmp.le.s32.totalorder 1, %s16
      %p177 = scmp.lt.s32.totalorder %s16, 3
      %p178 = pnand %p176, %p177
      %p179 = pneg %p178
      // Predicated region
      $region29: #{tpu_custom_call.1} parent=5 // pred_check
        _
      $region30: #{tpu_custom_call.1} parent=5 // pred_check_branch
        %181 = sbr.rel (%p178) target = $region32
      $region31: #{tpu_custom_call.1} parent=5 // pred_region
        %s182 = ssub.s32 %s16, 1
        %s183 = sand.u32 %s29, 1
        %s184 = scalar_lea.sflag [#allocation3], %s183
        %s185 = sand.u32 %s29, 1
        %s186 = smul.addr %s185, 16
        %s187 = scalar_lea.vmem [#allocation2], %s186
        // Predicated region
        $region33: #{tpu_custom_call.1} parent=31 // pred_check
          %p188 = pneg %p42
        $region34: #{tpu_custom_call.1} parent=31 // pred_check_branch
          %190 = sbr.rel (%p188) target = $region36
        $region35: #{tpu_custom_call.1} parent=31 // pred_region
          %191 = dma.done %s184, 256
        $region36: #{tpu_custom_call.1} parent=31 // pred_fallthru
          _
        // Predicated region
        $region37: #{tpu_custom_call.1} parent=31 // pred_check
          %p192 = pneg %p63
        $region38: #{tpu_custom_call.1} parent=31 // pred_check_branch
          %194 = sbr.rel (%p192) target = $region40
        $region39: #{tpu_custom_call.1} parent=31 // pred_region
          %195 = dma.done [#allocation6], 1152
        $region40: #{tpu_custom_call.1} parent=31 // pred_fallthru
          _
        // Predicated region
        $region41: #{tpu_custom_call.1} parent=31 // pred_check
          %p196 = pneg %p84
        $region42: #{tpu_custom_call.1} parent=31 // pred_check_branch
          %198 = sbr.rel (%p196) target = $region44
        $region43: #{tpu_custom_call.1} parent=31 // pred_region
          %199 = dma.done [#allocation6], 256
        $region44: #{tpu_custom_call.1} parent=31 // pred_fallthru
          _
        %s200 = sand.u32 %s29, 1
        %s201 = scalar_lea.sflag [#allocation3], %s200
        %s202 = sand.u32 %s29, 1
        %s203 = smul.addr %s202, 16
        %s204 = scalar_lea.vmem [#allocation2], %s203
        %p205 = pneg %p42
        %p206 = pneg %p39
        %p207 = pneg %p63
        %p208 = pneg %p60
        %p209 = pneg %p84
        %p210 = pneg %p81
        %p211 = pneg %p110
        %p212 = pneg %p107
        %s213 = sand.u32 %s97, 1
        %s214 = scalar_lea.sflag [#allocation4], %s213
        %s215 = sand.u32 %s97, 1
        %s216 = smul.addr %s215, 36
        %s217 = scalar_lea.vmem [#allocation8], %s216
        %v218 = vld [vmem:[%s187] sm:$0xff]
        %v219 = vld [vmem:[%s187 + $0x8] sm:$0xff]
        %v220 = vld [vmem:[#allocation7] sm:$0xff]
        %v221 = vld [vmem:[#allocation7 + $0x8] sm:$0xff]
        %vm222 = vcmask 130048
        %v224 = vsel %vm222, %v218, 0
        %v227 = vsel %vm222, %v219, 0
        %229 = vmatprep.subr.mxu0 0.0
        %230 = vmatpush1.msra.mxu0 %v220
        %231 = vmatprep.subr.mxu0 0.0
        %232 = vmatpush1.msra.mxu0 %v221
        %233 = vmatprep.subr.mxu0 0.0
        %234 = vmatpush1.msra.mxu0 0.0
        %235 = vmatprep.subr.mxu0 0.0
        %236 = vmatpush1.msra.mxu0 0.0
        %237 = vmatprep.subr.mxu0 0.0
        %238 = vmatpush1.msra.mxu0 0.0
        %239 = vmatprep.subr.mxu0 0.0
        %240 = vmatpush1.msra.mxu0 0.0
        %241 = vmatprep.subr.mxu0 0.0
        %242 = vmatpush1.msra.mxu0 0.0
        %243 = vmatprep.subr.mxu0 0.0
        %244 = vmatpush1.msra.mxu0 0.0
        %245 = vmatprep.subr.mxu0 0.0
        %246 = vmatpush1.msra.mxu0 0.0
        %247 = vmatprep.subr.mxu0 0.0
        %248 = vmatpush1.msra.mxu0 0.0
        %249 = vmatprep.subr.mxu0 0.0
        %250 = vmatpush1.msra.mxu0 0.0
        %251 = vmatprep.subr.mxu0 0.0
        %252 = vmatpush1.msra.mxu0 0.0
        %253 = vmatprep.subr.mxu0 0.0
        %254 = vmatpush1.msra.mxu0 0.0
        %255 = vmatprep.subr.mxu0 0.0
        %256 = vmatpush1.msra.mxu0 0.0
        %257 = vmatprep.subr.mxu0 0.0
        %258 = vmatpush1.msra.mxu0 0.0
        %259 = vmatprep.subr.mxu0 0.0
        %260 = vmatpush1.msra.mxu0 0.0
        %261 = vmatprep.subr.mxu0 0.0
        %262 = vmatpush1.msra.mxu0 0.0
        %263 = vmatprep.subr.mxu0 0.0
        %264 = vmatpush1.msra.mxu0 0.0
        %265 = vmatprep.subr.mxu0 0.0
        %266 = vmatpush1.msra.mxu0 0.0
        %267 = vmatprep.subr.mxu0 0.0
        %268 = vmatpush1.msra.mxu0 0.0
        %269 = vmatprep.subr.mxu0 0.0
        %270 = vmatpush1.msra.mxu0 0.0
        %271 = vmatprep.subr.mxu0 0.0
        %272 = vmatpush1.msra.mxu0 0.0
        %273 = vmatprep.subr.mxu0 0.0
        %274 = vmatpush1.msra.mxu0 0.0
        %275 = vmatprep.subr.mxu0 0.0
        %276 = vmatpush1.msra.mxu0 0.0
        %277 = vmatprep.subr.mxu0 0.0
        %278 = vmatpush1.msra.mxu0 0.0
        %279 = vmatprep.subr.mxu0 0.0
        %280 = vmatpush1.msra.mxu0 0.0
        %281 = vmatprep.subr.mxu0 0.0
        %282 = vmatpush1.msra.mxu0 0.0
        %283 = vmatprep.subr.mxu0 0.0
        %284 = vmatpush1.msra.mxu0 0.0
        %285 = vmatprep.subr.mxu0 0.0
        %286 = vmatpush1.msra.mxu0 0.0
        %287 = vmatprep.subr.mxu0 0.0
        %288 = vmatpush1.msra.mxu0 0.0
        %289 = vmatprep.subr.mxu0 0.0
        %290 = vmatpush1.msra.mxu0 0.0
        %291 = vmatprep.subr.mxu0 0.0
        %292 = vmatpush1.msra.mxu0 0.0
        %293 = vmatprep.mubr.f32.mxu0 0.0
        %294 = vmatmul.mubr.f32.gmra.mrb[0].mxu0 %v224
        %v295 = vpop.f32.mrb[0].mxu0
        %v296 = vadd.f32 0.0, %v295
        %v297 = vpop.f32.mrb[0].mxu0
        %298 = vmatprep.mubr.f32.mxu0 0.0
        %299 = vmatmul.mubr.f32.gmra.mrb[0].mxu0 %v227
        %v300 = vpop.f32.mrb[0].mxu0
        %v301 = vadd.f32 0.0, %v300
        %v302 = vpop.f32.mrb[0].mxu0
        %303 = vdwg.mxu0
        %v304 = vld [vmem:[#allocation5] sm:$0xff]
        %v305 = vld [vmem:[#allocation5 + $0x8] sm:$0xff]
        %v306 = vld [vmem:[#allocation5 + $0x10] sm:$0xff]
        %v307 = vld [vmem:[#allocation5 + $0x18] sm:$0xff]
        %v308 = vld [vmem:[#allocation5 + $0x20] sm:$0xff]
        %v309 = vld [vmem:[#allocation5 + $0x28] sm:$0xff]
        %v310 = vld [vmem:[#allocation5 + $0x30] sm:$0xff]
        %v311 = vld [vmem:[#allocation5 + $0x38] sm:$0xff]
        %v312 = vld [vmem:[#allocation5 + $0x40] sm:$0xff]
        %v314 = vsel %vm222, %v304, 0
        %v317 = vsel %vm222, %v305, 0
        %v320 = vsel %vm222, %v306, 0
        %v323 = vsel %vm222, %v307, 0
        %v326 = vsel %vm222, %v308, 0
        %v329 = vsel %vm222, %v309, 0
        %v332 = vsel %vm222, %v310, 0
        %v335 = vsel %vm222, %v311, 0
        %v338 = vsel %vm222, %v312, 0
        %340 = vmatprep.subr.mxu0 0.0
        %341 = vmatpush1.msra.mxu0 %v296
        %342 = vmatprep.subr.mxu0 0.0
        %343 = vmatpush1.msra.mxu0 %v301
        %344 = vmatprep.subr.mxu0 0.0
        %345 = vmatpush1.msra.mxu0 0.0
        %346 = vmatprep.subr.mxu0 0.0
        %347 = vmatpush1.msra.mxu0 0.0
        %348 = vmatprep.subr.mxu0 0.0
        %349 = vmatpush1.msra.mxu0 0.0
        %350 = vmatprep.subr.mxu0 0.0
        %351 = vmatpush1.msra.mxu0 0.0
        %352 = vmatprep.subr.mxu0 0.0
        %353 = vmatpush1.msra.mxu0 0.0
        %354 = vmatprep.subr.mxu0 0.0
        %355 = vmatpush1.msra.mxu0 0.0
        %356 = vmatprep.subr.mxu0 0.0
        %357 = vmatpush1.msra.mxu0 0.0
        %358 = vmatprep.subr.mxu0 0.0
        %359 = vmatpush1.msra.mxu0 0.0
        %360 = vmatprep.subr.mxu0 0.0
        %361 = vmatpush1.msra.mxu0 0.0
        %362 = vmatprep.subr.mxu0 0.0
        %363 = vmatpush1.msra.mxu0 0.0
        %364 = vmatprep.subr.mxu0 0.0
        %365 = vmatpush1.msra.mxu0 0.0
        %366 = vmatprep.subr.mxu0 0.0
        %367 = vmatpush1.msra.mxu0 0.0
        %368 = vmatprep.subr.mxu0 0.0
        %369 = vmatpush1.msra.mxu0 0.0
        %370 = vmatprep.subr.mxu0 0.0
        %371 = vmatpush1.msra.mxu0 0.0
        %372 = vmatprep.subr.mxu0 0.0
        %373 = vmatpush1.msra.mxu0 0.0
        %374 = vmatprep.subr.mxu0 0.0
        %375 = vmatpush1.msra.mxu0 0.0
        %376 = vmatprep.subr.mxu0 0.0
        %377 = vmatpush1.msra.mxu0 0.0
        %378 = vmatprep.subr.mxu0 0.0
        %379 = vmatpush1.msra.mxu0 0.0
        %380 = vmatprep.subr.mxu0 0.0
        %381 = vmatpush1.msra.mxu0 0.0
        %382 = vmatprep.subr.mxu0 0.0
        %383 = vmatpush1.msra.mxu0 0.0
        %384 = vmatprep.subr.mxu0 0.0
        %385 = vmatpush1.msra.mxu0 0.0
        %386 = vmatprep.subr.mxu0 0.0
        %387 = vmatpush1.msra.mxu0 0.0
        %388 = vmatprep.subr.mxu0 0.0
        %389 = vmatpush1.msra.mxu0 0.0
        %390 = vmatprep.subr.mxu0 0.0
        %391 = vmatpush1.msra.mxu0 0.0
        %392 = vmatprep.subr.mxu0 0.0
        %393 = vmatpush1.msra.mxu0 0.0
        %394 = vmatprep.subr.mxu0 0.0
        %395 = vmatpush1.msra.mxu0 0.0
        %396 = vmatprep.subr.mxu0 0.0
        %397 = vmatpush1.msra.mxu0 0.0
        %398 = vmatprep.subr.mxu0 0.0
        %399 = vmatpush1.msra.mxu0 0.0
        %400 = vmatprep.subr.mxu0 0.0
        %401 = vmatpush1.msra.mxu0 0.0
        %402 = vmatprep.subr.mxu0 0.0
        %403 = vmatpush1.msra.mxu0 0.0
        %404 = vmatprep.mubr.f32.mxu0 0.0
        %405 = vmatmul.mubr.f32.gmra.mrb[0].mxu0 %v314
        %v406 = vpop.f32.mrb[0].mxu0
        %v407 = vadd.f32 0.0, %v406
        %v408 = vpop.f32.mrb[0].mxu0
        %409 = vmatprep.mubr.f32.mxu0 0.0
        %410 = vmatmul.mubr.f32.gmra.mrb[0].mxu0 %v317
        %v411 = vpop.f32.mrb[0].mxu0
        %v412 = vadd.f32 0.0, %v411
        %v413 = vpop.f32.mrb[0].mxu0
        %414 = vmatprep.mubr.f32.mxu0 0.0
        %415 = vmatmul.mubr.f32.gmra.mrb[0].mxu0 %v320
        %v416 = vpop.f32.mrb[0].mxu0
        %v417 = vadd.f32 0.0, %v416
        %v418 = vpop.f32.mrb[0].mxu0
        %419 = vmatprep.mubr.f32.mxu0 0.0
        %420 = vmatmul.mubr.f32.gmra.mrb[0].mxu0 %v323
        %v421 = vpop.f32.mrb[0].mxu0
        %v422 = vadd.f32 0.0, %v421
        %v423 = vpop.f32.mrb[0].mxu0
        %424 = vmatprep.mubr.f32.mxu0 0.0
        %425 = vmatmul.mubr.f32.gmra.mrb[0].mxu0 %v326
        %v426 = vpop.f32.mrb[0].mxu0
        %v427 = vadd.f32 0.0, %v426
        %v428 = vpop.f32.mrb[0].mxu0
        %429 = vmatprep.mubr.f32.mxu0 0.0
        %430 = vmatmul.mubr.f32.gmra.mrb[0].mxu0 %v329
        %v431 = vpop.f32.mrb[0].mxu0
        %v432 = vadd.f32 0.0, %v431
        %v433 = vpop.f32.mrb[0].mxu0
        %434 = vmatprep.mubr.f32.mxu0 0.0
        %435 = vmatmul.mubr.f32.gmra.mrb[0].mxu0 %v332
        %v436 = vpop.f32.mrb[0].mxu0
        %v437 = vadd.f32 0.0, %v436
        %v438 = vpop.f32.mrb[0].mxu0
        %439 = vmatprep.mubr.f32.mxu0 0.0
        %440 = vmatmul.mubr.f32.gmra.mrb[0].mxu0 %v335
        %v441 = vpop.f32.mrb[0].mxu0
        %v442 = vadd.f32 0.0, %v441
        %v443 = vpop.f32.mrb[0].mxu0
        %444 = vmatprep.mubr.f32.mxu0 0.0
        %445 = vmatmul.mubr.f32.gmra.mrb[0].mxu0 %v338
        %v446 = vpop.f32.mrb[0].mxu0
        %v447 = vadd.f32 0.0, %v446
        %v448 = vpop.f32.mrb[0].mxu0
        %449 = vdwg.mxu0
        %v450 = vpack.c.bf16 %v412, %v407
        %v451 = vpack.c.bf16 %v422, %v417
        %v452 = vpack.c.bf16 %v432, %v427
        %v453 = vpack.c.bf16 %v442, %v437
        %v454 = vpack.c.bf16 %v447, %v447
        %v460 = vunpack.c.l.b16 %v450
        %v461 = vunpack.c.h.b16 %v450
        %v462 = vunpack.c.l.b16 %v451
        %v463 = vunpack.c.h.b16 %v451
        %v464 = vunpack.c.l.b16 %v452
        %v465 = vunpack.c.h.b16 %v452
        %v466 = vunpack.c.l.b16 %v453
        %v467 = vunpack.c.h.b16 %v453
        %v468 = vunpack.c.l.b16 %v454
        %v469 = vpack.c.b16 %v460, %v460
        %v470 = vpack.c.b16 %v461, %v461
        %v471 = vpack.c.b16 %v462, %v462
        %v472 = vpack.c.b16 %v463, %v463
        %v473 = vpack.c.b16 %v464, %v464
        %v474 = vpack.c.b16 %v465, %v465
        %v475 = vpack.c.b16 %v466, %v466
        %v476 = vpack.c.b16 %v467, %v467
        %v477 = vpack.c.b16 %v468, %v468
        %487 = vst [vmem:[%s217] sm:$0xf] %v469
        %488 = vst [vmem:[%s217 + $0x4] sm:$0xf] %v470
        %489 = vst [vmem:[%s217 + $0x8] sm:$0xf] %v471
        %490 = vst [vmem:[%s217 + $0xc] sm:$0xf] %v472
        %491 = vst [vmem:[%s217 + $0x10] sm:$0xf] %v473
        %492 = vst [vmem:[%s217 + $0x14] sm:$0xf] %v474
        %493 = vst [vmem:[%s217 + $0x18] sm:$0xf] %v475
        %494 = vst [vmem:[%s217 + $0x1c] sm:$0xf] %v476
        %495 = vst [vmem:[%s217 + $0x20] sm:$0xf] %v477
        %s496 = sand.u32 %s97, 1
        %s497 = scalar_lea.sflag [#allocation4], %s496
        %s498 = sand.u32 %s97, 1
        %s499 = smul.addr %s498, 36
        %s500 = scalar_lea.vmem [#allocation8], %s499
        // Predicated region
        $region45: #{tpu_custom_call.1} parent=31 // pred_check
          %p501 = pneg %p107
        $region46: #{tpu_custom_call.1} parent=31 // pred_check_branch
          %503 = sbr.rel (%p501) target = $region48
        $region47: #{tpu_custom_call.1} parent=31 // pred_region
          %s505 = ssub.s32 576, 576
          %506 = vsyncadd %s497, %s505
          %s507 = smul.addr %s21, 9
          %s508 = smul.addr %s507, 64
          %s509 = scalar_lea.hbm %s3, %s508
          %s510 = sshll.u32 %s500, 4
          %s511 = int_to_ptr.vmem [resolvable:$true] %s510
          %516 = dma.vmem_to_hbm [thread:$0]  %s511, 576, %s509, %s497, 64, 64, 4
        $region48: #{tpu_custom_call.1} parent=31 // pred_fallthru
          _
      $region32: #{tpu_custom_call.1} parent=5 // pred_fallthru
        _
      %p517 = scmp.le.s32.totalorder 2, %s16
      // Predicated region
      $region49: #{tpu_custom_call.1} parent=5 // pred_check
        %p518 = pneg %p517
      $region50: #{tpu_custom_call.1} parent=5 // pred_check_branch
        %520 = sbr.rel (%p518) target = $region52
      $region51: #{tpu_custom_call.1} parent=5 // pred_region
        %s521 = ssub.s32 %s16, 2
        // Predicated region
        $region53: #{tpu_custom_call.1} parent=51 // pred_check
          %p522 = pneg %p113
        $region54: #{tpu_custom_call.1} parent=51 // pred_check_branch
          %524 = sbr.rel (%p522) target = $region56
        $region55: #{tpu_custom_call.1} parent=51 // pred_region
          %s525 = sand.u32 %s98, 1
          %s526 = scalar_lea.sflag [#allocation4], %s525
          %s527 = sand.u32 %s98, 1
          %s528 = smul.addr %s527, 36
          %s529 = scalar_lea.vmem [#allocation8], %s528
          %530 = dma.done %s526, 576
        $region56: #{tpu_custom_call.1} parent=51 // pred_fallthru
          _
      $region52: #{tpu_custom_call.1} parent=5 // pred_fallthru
        _
    $region6: #{tpu_custom_call.1} parent=1 // loop_footer
      %s20 = sadd.s32 1, %s16
    $region7: #{tpu_custom_call.1} parent=1 // loop_footer_branch
      %15 = sbr.rel target = $region3
    $region8: #{tpu_custom_call.1} parent=1 // loop_exit
      _
    %531 = vsyncpa [#allocation3], 1
    %s532 = scalar_lea.sflag [#allocation3], 1
    %533 = vsyncpa %s532, 1
    %534 = vsyncpa [#allocation6], 1
    %535 = vsyncpa [#allocation4], 1
    %s536 = scalar_lea.sflag [#allocation4], 1
    %537 = vsyncpa %s536, 1

</llo_original>
